<compile_context>
chip_gen: v7x
topology: tpu7x:2x2x1
jax: 0.10.0
libtpu: 0.0.40
codegen_flags: <defaults>
</compile_context>

<pallas_src>
import functools

import jax
import jax.numpy as jnp
from jax import lax
from jax.experimental import pallas as pl
from jax.experimental.pallas import tpu as pltpu


def _lstm_head_kernel(x_ref, wih_ref, whh_ref, b_ref, whead_ref, bhead_ref,
                      out_ref, xw_ref, *, seq_len, batch, hidden):
    S, B, H = seq_len, batch, hidden
    A2 = out_ref.shape[-1]
    A = A2 // 2

    # Hoisted load: recurrent weight touched once (bf16 -> half the footprint).
    w_hh = whh_ref[...]                                        # (H, 4H) bf16

    # Input projection for ALL time steps in one MXU call (bf16 operands,
    # f32 accumulation), bias folded in once.  Staged in VMEM scratch.
    xw_ref[...] = (jnp.dot(x_ref[...], wih_ref[...],
                           preferred_element_type=jnp.float32)
                   + b_ref[...])                               # (S*B, 4H) f32

    def step(t, carry):
        h, c = carry                                           # h bf16, c f32
        x_g = xw_ref[pl.ds(t * B, B), :]                       # (B, 4H) f32
        # Only h @ W_hh is on the serial per-step critical path.
        gates = x_g + jnp.dot(h, w_hh, preferred_element_type=jnp.float32)
        # Gate columns packed as [i | f | o | g]: sigmoid on 3H, tanh on H.
        sig = jax.nn.sigmoid(gates[:, :3 * H])
        i_g = sig[:, 0 * H:1 * H]
        f_g = sig[:, 1 * H:2 * H]
        o_g = sig[:, 2 * H:3 * H]
        g_g = jnp.tanh(gates[:, 3 * H:])
        c_new = f_g * c + i_g * g_g                            # f32 cell state
        h_new = o_g * jnp.tanh(c_new)
        return h_new.astype(jnp.bfloat16), c_new

    h0 = jnp.zeros((B, H), jnp.bfloat16)
    c0 = jnp.zeros((B, H), jnp.float32)
    h, _ = lax.fori_loop(0, S, step, (h0, c0), unroll=True)

    # Fused output heads: one (B, H) @ (H, 2A) matmul; exp only on the logstd
    # half via a lane-index select -> single lane-dense store / output DMA.
    head = (jnp.dot(h.astype(jnp.float32), whead_ref[...],
                    preferred_element_type=jnp.float32)
            + bhead_ref[...])                                  # (B, 2A) f32
    lane = lax.broadcasted_iota(jnp.int32, (B, A2), 1)
    out_ref[...] = jnp.where(lane >= A, jnp.exp(head), head)


def continuous_action_lstm_forward(actions, kparams):
    """actions: (S, B, A) float32.  Returns (mu, std), each (B, A) float32."""
    S, B, A = actions.shape
    H = kparams["w_hh_t"].shape[0]

    # Flatten time+batch so the hoisted input projection is one 2-D matmul;
    # cast to bf16 for the MXU (accumulation stays f32 inside the kernel).
    x2d = actions.reshape(S * B, A).astype(jnp.bfloat16)

    kernel = functools.partial(_lstm_head_kernel, seq_len=S, batch=B, hidden=H)
    vmem = pl.BlockSpec(memory_space=pltpu.MemorySpace.VMEM)

    # TODO(synk): for production batch sizes on v7x, add a leading "parallel"
    # grid axis over batch shards so both TensorCores are used; at B=2 it is moot.
    out = pl.pallas_call(
        kernel,
        out_shape=jax.ShapeDtypeStruct((B, 2 * A), jnp.float32),
        in_specs=[vmem, vmem, vmem, vmem, vmem, vmem],
        out_specs=vmem,
        scratch_shapes=[pltpu.VMEM((S * B, 4 * H), jnp.float32)],
    )(x2d,
      kparams["w_ih_t"], kparams["w_hh_t"], kparams["b_gates"],
      kparams["w_head_t"], kparams["b_head"])
    return out[:, :A], out[:, A:]


def init_raw_params(key, action_dims, hidden_dims):
    """Deterministic synthetic init matching nn.LSTM / nn.Linear shapes (f32)."""
    ks = jax.random.split(key, 8)
    s = 1.0 / jnp.sqrt(hidden_dims)
    u = lambda k, shape: jax.random.uniform(k, shape, jnp.float32, -s, s)
    return {
        "w_ih": u(ks[0], (4 * hidden_dims, action_dims)),   # rows [i; f; g; o]
        "w_hh": u(ks[1], (4 * hidden_dims, hidden_dims)),
        "b_ih": u(ks[2], (4 * hidden_dims,)),
        "b_hh": u(ks[3], (4 * hidden_dims,)),
        "w_mu": u(ks[4], (action_dims, hidden_dims)),
        "b_mu": u(ks[5], (action_dims,)),
        "w_logstd": u(ks[6], (action_dims, hidden_dims)),
        "b_logstd": u(ks[7], (action_dims,)),
    }
    # TODO(synk): encoder/get_encoding path (tanh(Linear(LSTM outputs))) is
    # defined in __init__ but not exercised by forward(); not implemented here.


def _reorder_gates(w_t):
    """Last-dim gate blocks: PyTorch order [i|f|g|o] -> kernel order [i|f|o|g]."""
    i, f, g, o = jnp.split(w_t, 4, axis=-1)
    return jnp.concatenate([i, f, o, g], axis=-1)


def prepare_kernel_params(raw):
    """Transpose, repack gate order, fuse biases/heads, bf16 MXU operands."""
    w_ih_t = _reorder_gates(raw["w_ih"].T)                       # (A, 4H)
    w_hh_t = _reorder_gates(raw["w_hh"].T)                       # (H, 4H)
    b_gates = _reorder_gates((raw["b_ih"] + raw["b_hh"]).reshape(1, -1))
    return {
        "w_ih_t": w_ih_t.astype(jnp.bfloat16),
        "w_hh_t": w_hh_t.astype(jnp.bfloat16),
        "b_gates": b_gates,                                      # (1, 4H) f32
        # Fused output heads: [W_mu^T | W_logstd^T] -> (H, 2A), biases (1, 2A).
        "w_head_t": jnp.concatenate([raw["w_mu"].T, raw["w_logstd"].T], axis=1),
        "b_head": jnp.concatenate([raw["b_mu"], raw["b_logstd"]]).reshape(1, -1),
    }


def _reference_forward(actions, raw):
    """Pure-JAX f32 reference with PyTorch gate order (sanity check)."""
    S, B, A = actions.shape
    H = raw["w_hh"].shape[1]
    w_ih_t = raw["w_ih"].T
    w_hh_t = raw["w_hh"].T
    b = (raw["b_ih"] + raw["b_hh"]).reshape(1, -1)
    h = jnp.zeros((B, H), jnp.float32)
    c = jnp.zeros((B, H), jnp.float32)
    for t in range(S):
        g = actions[t] @ w_ih_t + h @ w_hh_t + b
        i = jax.nn.sigmoid(g[:, :H])
        f = jax.nn.sigmoid(g[:, H:2 * H])
        gg = jnp.tanh(g[:, 2 * H:3 * H])
        o = jax.nn.sigmoid(g[:, 3 * H:])
        c = f * c + i * gg
        h = o * jnp.tanh(c)
    mu = h @ raw["w_mu"].T + raw["b_mu"]
    logstd = h @ raw["w_logstd"].T + raw["b_logstd"]
    return mu, jnp.exp(logstd)


if __name__ == "__main__":
    SEQ, BATCH, ACTION_DIMS, HIDDEN = 8, 2, 4, 32

    key = jax.random.PRNGKey(0)
    k_x, k_p = jax.random.split(key)
    actions = jax.random.normal(k_x, (SEQ, BATCH, ACTION_DIMS), jnp.float32)
    raw = init_raw_params(k_p, ACTION_DIMS, HIDDEN)
    kparams = prepare_kernel_params(raw)

    mu, std = continuous_action_lstm_forward(actions, kparams)
    jax.block_until_ready((mu, std))

    mu_ref, std_ref = _reference_forward(actions, raw)
    # bf16 MXU operands with f32 accumulation over an 8-step recurrence:
    # relaxed (but still tight) tolerances vs the pure-f32 reference.
    assert mu.shape == (BATCH, ACTION_DIMS) and std.shape == (BATCH, ACTION_DIMS)
    assert jnp.all(std > 0.0)
    assert jnp.allclose(mu, mu_ref, atol=2e-2, rtol=2e-2)
    assert jnp.allclose(std, std_ref, atol=2e-2, rtol=2e-2)

    print("KERNEL_OK")
</pallas_src>

<mosaic_0001>
module attributes {stable_mosaic.version = 11 : i64} {
  func.func @_lstm_head_kernel(%arg0: memref<16x4xbf16, #tpu.memory_space<vmem>>, %arg1: memref<4x128xbf16, #tpu.memory_space<vmem>>, %arg2: memref<32x128xbf16, #tpu.memory_space<vmem>>, %arg3: memref<1x128xf32, #tpu.memory_space<vmem>>, %arg4: memref<32x8xf32, #tpu.memory_space<vmem>>, %arg5: memref<1x8xf32, #tpu.memory_space<vmem>>, %arg6: memref<2x8xf32, #tpu.memory_space<vmem>>, %arg7: memref<16x128xf32, #tpu.memory_space<vmem>>) attributes {dimension_semantics = [], scalar_prefetch = 0 : i64, scratch_operands = 1 : i64, tpu.core_type = #tpu.core_type<tc>} {
    %c0 = arith.constant 0 : index
    %c0_0 = arith.constant 0 : index
    %0 = vector.load %arg2[%c0, %c0_0] : memref<32x128xbf16, #tpu.memory_space<vmem>>, vector<32x128xbf16>
    %c0_1 = arith.constant 0 : index
    %c0_2 = arith.constant 0 : index
    %1 = vector.load %arg0[%c0_1, %c0_2] : memref<16x4xbf16, #tpu.memory_space<vmem>>, vector<16x4xbf16>
    %c0_3 = arith.constant 0 : index
    %c0_4 = arith.constant 0 : index
    %2 = vector.load %arg1[%c0_3, %c0_4] : memref<4x128xbf16, #tpu.memory_space<vmem>>, vector<4x128xbf16>
    %cst = arith.constant dense<0.000000e+00> : vector<16x128xf32>
    %3 = tpu.matmul %1, %2, %cst {dimension_numbers = #tpu.dot_dimension_numbers<[1], [0], [0], [1], [0, 0, 1, 1], [], []>} : vector<16x4xbf16>, vector<4x128xbf16>, vector<16x128xf32> -> vector<16x128xf32>
    %c0_5 = arith.constant 0 : index
    %c0_6 = arith.constant 0 : index
    %4 = vector.load %arg3[%c0_5, %c0_6] : memref<1x128xf32, #tpu.memory_space<vmem>>, vector<1x128xf32>
    %5 = vector.broadcast %4 : vector<1x128xf32> to vector<16x128xf32>
    %6 = arith.addf %3, %5 : vector<16x128xf32>
    %c0_7 = arith.constant 0 : index
    %c0_8 = arith.constant 0 : index
    %7 = vector.load %arg7[%c0_7, %c0_8] : memref<16x128xf32, #tpu.memory_space<vmem>>, vector<16x128xf32>
    tpu.vector_store %arg7[%c0_7, %c0_8], %6 {strides = array<i32>} : memref<16x128xf32, #tpu.memory_space<vmem>>, vector<16x128xf32>,
    %cst_9 = arith.constant 0.000000e+00 : bf16
    %8 = vector.broadcast %cst_9 : bf16 to vector<2x32xbf16>
    %cst_10 = arith.constant 0.000000e+00 : f32
    %9 = vector.broadcast %cst_10 : f32 to vector<2x32xf32>
    %c0_i32 = arith.constant 0 : i32
    %c2_i32 = arith.constant 2 : i32
    %10 = arith.muli %c0_i32, %c2_i32 : i32
    %11 = arith.index_cast %10 : i32 to index
    %c0_11 = arith.constant 0 : index
    %12 = vector.load %arg7[%11, %c0_11] : memref<16x128xf32, #tpu.memory_space<vmem>>, vector<2x128xf32>
    %cst_12 = arith.constant dense<0.000000e+00> : vector<2x128xf32>
    %13 = tpu.matmul %8, %0, %cst_12 {dimension_numbers = #tpu.dot_dimension_numbers<[1], [0], [0], [1], [0, 0, 1, 1], [], []>} : vector<2x32xbf16>, vector<32x128xbf16>, vector<2x128xf32> -> vector<2x128xf32>
    %14 = arith.addf %12, %13 : vector<2x128xf32>
    %15 = vector.extract_strided_slice %14 {offsets = [0, 0], sizes = [2, 96], strides = [1, 1]} : vector<2x128xf32> to vector<2x96xf32>
    %16 = arith.negf %15 : vector<2x96xf32>
    %17 = math.exp %16 : vector<2x96xf32>
    %cst_13 = arith.constant 1.000000e+00 : f32
    %18 = vector.broadcast %cst_13 : f32 to vector<2x96xf32>
    %19 = arith.addf %18, %17 : vector<2x96xf32>
    %20 = arith.divf %18, %19 : vector<2x96xf32>
    %21 = vector.extract_strided_slice %20 {offsets = [0, 0], sizes = [2, 32], strides = [1, 1]} : vector<2x96xf32> to vector<2x32xf32>
    %22 = vector.extract_strided_slice %20 {offsets = [0, 32], sizes = [2, 32], strides = [1, 1]} : vector<2x96xf32> to vector<2x32xf32>
    %23 = vector.extract_strided_slice %20 {offsets = [0, 64], sizes = [2, 32], strides = [1, 1]} : vector<2x96xf32> to vector<2x32xf32>
    %24 = vector.extract_strided_slice %14 {offsets = [0, 96], sizes = [2, 32], strides = [1, 1]} : vector<2x128xf32> to vector<2x32xf32>
    %25 = math.tanh %24 : vector<2x32xf32>
    %26 = arith.mulf %22, %9 : vector<2x32xf32>
    %27 = arith.mulf %21, %25 : vector<2x32xf32>
    %28 = arith.addf %26, %27 : vector<2x32xf32>
    %29 = math.tanh %28 : vector<2x32xf32>
    %30 = arith.mulf %23, %29 : vector<2x32xf32>
    %31 = arith.truncf %30 : vector<2x32xf32> to vector<2x32xbf16>
    %c1_i32 = arith.constant 1 : i32
    %c2_i32_14 = arith.constant 2 : i32
    %32 = arith.muli %c1_i32, %c2_i32_14 : i32
    %33 = arith.index_cast %32 : i32 to index
    %c0_15 = arith.constant 0 : index
    %34 = vector.load %arg7[%33, %c0_15] : memref<16x128xf32, #tpu.memory_space<vmem>>, vector<2x128xf32>
    %cst_16 = arith.constant dense<0.000000e+00> : vector<2x128xf32>
    %35 = tpu.matmul %31, %0, %cst_16 {dimension_numbers = #tpu.dot_dimension_numbers<[1], [0], [0], [1], [0, 0, 1, 1], [], []>} : vector<2x32xbf16>, vector<32x128xbf16>, vector<2x128xf32> -> vector<2x128xf32>
    %36 = arith.addf %34, %35 : vector<2x128xf32>
    %37 = vector.extract_strided_slice %36 {offsets = [0, 0], sizes = [2, 96], strides = [1, 1]} : vector<2x128xf32> to vector<2x96xf32>
    %38 = arith.negf %37 : vector<2x96xf32>
    %39 = math.exp %38 : vector<2x96xf32>
    %cst_17 = arith.constant 1.000000e+00 : f32
    %40 = vector.broadcast %cst_17 : f32 to vector<2x96xf32>
    %41 = arith.addf %40, %39 : vector<2x96xf32>
    %42 = arith.divf %40, %41 : vector<2x96xf32>
    %43 = vector.extract_strided_slice %42 {offsets = [0, 0], sizes = [2, 32], strides = [1, 1]} : vector<2x96xf32> to vector<2x32xf32>
    %44 = vector.extract_strided_slice %42 {offsets = [0, 32], sizes = [2, 32], strides = [1, 1]} : vector<2x96xf32> to vector<2x32xf32>
    %45 = vector.extract_strided_slice %42 {offsets = [0, 64], sizes = [2, 32], strides = [1, 1]} : vector<2x96xf32> to vector<2x32xf32>
    %46 = vector.extract_strided_slice %36 {offsets = [0, 96], sizes = [2, 32], strides = [1, 1]} : vector<2x128xf32> to vector<2x32xf32>
    %47 = math.tanh %46 : vector<2x32xf32>
    %48 = arith.mulf %44, %28 : vector<2x32xf32>
    %49 = arith.mulf %43, %47 : vector<2x32xf32>
    %50 = arith.addf %48, %49 : vector<2x32xf32>
    %51 = math.tanh %50 : vector<2x32xf32>
    %52 = arith.mulf %45, %51 : vector<2x32xf32>
    %53 = arith.truncf %52 : vector<2x32xf32> to vector<2x32xbf16>
    %c2_i32_18 = arith.constant 2 : i32
    %c2_i32_19 = arith.constant 2 : i32
    %54 = arith.muli %c2_i32_18, %c2_i32_19 : i32
    %55 = arith.index_cast %54 : i32 to index
    %c0_20 = arith.constant 0 : index
    %56 = vector.load %arg7[%55, %c0_20] : memref<16x128xf32, #tpu.memory_space<vmem>>, vector<2x128xf32>
    %cst_21 = arith.constant dense<0.000000e+00> : vector<2x128xf32>
    %57 = tpu.matmul %53, %0, %cst_21 {dimension_numbers = #tpu.dot_dimension_numbers<[1], [0], [0], [1], [0, 0, 1, 1], [], []>} : vector<2x32xbf16>, vector<32x128xbf16>, vector<2x128xf32> -> vector<2x128xf32>
    %58 = arith.addf %56, %57 : vector<2x128xf32>
    %59 = vector.extract_strided_slice %58 {offsets = [0, 0], sizes = [2, 96], strides = [1, 1]} : vector<2x128xf32> to vector<2x96xf32>
    %60 = arith.negf %59 : vector<2x96xf32>
    %61 = math.exp %60 : vector<2x96xf32>
    %cst_22 = arith.constant 1.000000e+00 : f32
    %62 = vector.broadcast %cst_22 : f32 to vector<2x96xf32>
    %63 = arith.addf %62, %61 : vector<2x96xf32>
    %64 = arith.divf %62, %63 : vector<2x96xf32>
    %65 = vector.extract_strided_slice %64 {offsets = [0, 0], sizes = [2, 32], strides = [1, 1]} : vector<2x96xf32> to vector<2x32xf32>
    %66 = vector.extract_strided_slice %64 {offsets = [0, 32], sizes = [2, 32], strides = [1, 1]} : vector<2x96xf32> to vector<2x32xf32>
    %67 = vector.extract_strided_slice %64 {offsets = [0, 64], sizes = [2, 32], strides = [1, 1]} : vector<2x96xf32> to vector<2x32xf32>
    %68 = vector.extract_strided_slice %58 {offsets = [0, 96], sizes = [2, 32], strides = [1, 1]} : vector<2x128xf32> to vector<2x32xf32>
    %69 = math.tanh %68 : vector<2x32xf32>
    %70 = arith.mulf %66, %50 : vector<2x32xf32>
    %71 = arith.mulf %65, %69 : vector<2x32xf32>
    %72 = arith.addf %70, %71 : vector<2x32xf32>
    %73 = math.tanh %72 : vector<2x32xf32>
    %74 = arith.mulf %67, %73 : vector<2x32xf32>
    %75 = arith.truncf %74 : vector<2x32xf32> to vector<2x32xbf16>
    %c3_i32 = arith.constant 3 : i32
    %c2_i32_23 = arith.constant 2 : i32
    %76 = arith.muli %c3_i32, %c2_i32_23 : i32
    %77 = arith.index_cast %76 : i32 to index
    %c0_24 = arith.constant 0 : index
    %78 = vector.load %arg7[%77, %c0_24] : memref<16x128xf32, #tpu.memory_space<vmem>>, vector<2x128xf32>
    %cst_25 = arith.constant dense<0.000000e+00> : vector<2x128xf32>
    %79 = tpu.matmul %75, %0, %cst_25 {dimension_numbers = #tpu.dot_dimension_numbers<[1], [0], [0], [1], [0, 0, 1, 1], [], []>} : vector<2x32xbf16>, vector<32x128xbf16>, vector<2x128xf32> -> vector<2x128xf32>
    %80 = arith.addf %78, %79 : vector<2x128xf32>
    %81 = vector.extract_strided_slice %80 {offsets = [0, 0], sizes = [2, 96], strides = [1, 1]} : vector<2x128xf32> to vector<2x96xf32>
    %82 = arith.negf %81 : vector<2x96xf32>
    %83 = math.exp %82 : vector<2x96xf32>
    %cst_26 = arith.constant 1.000000e+00 : f32
    %84 = vector.broadcast %cst_26 : f32 to vector<2x96xf32>
    %85 = arith.addf %84, %83 : vector<2x96xf32>
    %86 = arith.divf %84, %85 : vector<2x96xf32>
    %87 = vector.extract_strided_slice %86 {offsets = [0, 0], sizes = [2, 32], strides = [1, 1]} : vector<2x96xf32> to vector<2x32xf32>
    %88 = vector.extract_strided_slice %86 {offsets = [0, 32], sizes = [2, 32], strides = [1, 1]} : vector<2x96xf32> to vector<2x32xf32>
    %89 = vector.extract_strided_slice %86 {offsets = [0, 64], sizes = [2, 32], strides = [1, 1]} : vector<2x96xf32> to vector<2x32xf32>
    %90 = vector.extract_strided_slice %80 {offsets = [0, 96], sizes = [2, 32], strides = [1, 1]} : vector<2x128xf32> to vector<2x32xf32>
    %91 = math.tanh %90 : vector<2x32xf32>
    %92 = arith.mulf %88, %72 : vector<2x32xf32>
    %93 = arith.mulf %87, %91 : vector<2x32xf32>
    %94 = arith.addf %92, %93 : vector<2x32xf32>
    %95 = math.tanh %94 : vector<2x32xf32>
    %96 = arith.mulf %89, %95 : vector<2x32xf32>
    %97 = arith.truncf %96 : vector<2x32xf32> to vector<2x32xbf16>
    %c4_i32 = arith.constant 4 : i32
    %c2_i32_27 = arith.constant 2 : i32
    %98 = arith.muli %c4_i32, %c2_i32_27 : i32
    %99 = arith.index_cast %98 : i32 to index
    %c0_28 = arith.constant 0 : index
    %100 = vector.load %arg7[%99, %c0_28] : memref<16x128xf32, #tpu.memory_space<vmem>>, vector<2x128xf32>
    %cst_29 = arith.constant dense<0.000000e+00> : vector<2x128xf32>
    %101 = tpu.matmul %97, %0, %cst_29 {dimension_numbers = #tpu.dot_dimension_numbers<[1], [0], [0], [1], [0, 0, 1, 1], [], []>} : vector<2x32xbf16>, vector<32x128xbf16>, vector<2x128xf32> -> vector<2x128xf32>
    %102 = arith.addf %100, %101 : vector<2x128xf32>
    %103 = vector.extract_strided_slice %102 {offsets = [0, 0], sizes = [2, 96], strides = [1, 1]} : vector<2x128xf32> to vector<2x96xf32>
    %104 = arith.negf %103 : vector<2x96xf32>
    %105 = math.exp %104 : vector<2x96xf32>
    %cst_30 = arith.constant 1.000000e+00 : f32
    %106 = vector.broadcast %cst_30 : f32 to vector<2x96xf32>
    %107 = arith.addf %106, %105 : vector<2x96xf32>
    %108 = arith.divf %106, %107 : vector<2x96xf32>
    %109 = vector.extract_strided_slice %108 {offsets = [0, 0], sizes = [2, 32], strides = [1, 1]} : vector<2x96xf32> to vector<2x32xf32>
    %110 = vector.extract_strided_slice %108 {offsets = [0, 32], sizes = [2, 32], strides = [1, 1]} : vector<2x96xf32> to vector<2x32xf32>
    %111 = vector.extract_strided_slice %108 {offsets = [0, 64], sizes = [2, 32], strides = [1, 1]} : vector<2x96xf32> to vector<2x32xf32>
    %112 = vector.extract_strided_slice %102 {offsets = [0, 96], sizes = [2, 32], strides = [1, 1]} : vector<2x128xf32> to vector<2x32xf32>
    %113 = math.tanh %112 : vector<2x32xf32>
    %114 = arith.mulf %110, %94 : vector<2x32xf32>
    %115 = arith.mulf %109, %113 : vector<2x32xf32>
    %116 = arith.addf %114, %115 : vector<2x32xf32>
    %117 = math.tanh %116 : vector<2x32xf32>
    %118 = arith.mulf %111, %117 : vector<2x32xf32>
    %119 = arith.truncf %118 : vector<2x32xf32> to vector<2x32xbf16>
    %c5_i32 = arith.constant 5 : i32
    %c2_i32_31 = arith.constant 2 : i32
    %120 = arith.muli %c5_i32, %c2_i32_31 : i32
    %121 = arith.index_cast %120 : i32 to index
    %c0_32 = arith.constant 0 : index
    %122 = vector.load %arg7[%121, %c0_32] : memref<16x128xf32, #tpu.memory_space<vmem>>, vector<2x128xf32>
    %cst_33 = arith.constant dense<0.000000e+00> : vector<2x128xf32>
    %123 = tpu.matmul %119, %0, %cst_33 {dimension_numbers = #tpu.dot_dimension_numbers<[1], [0], [0], [1], [0, 0, 1, 1], [], []>} : vector<2x32xbf16>, vector<32x128xbf16>, vector<2x128xf32> -> vector<2x128xf32>
    %124 = arith.addf %122, %123 : vector<2x128xf32>
    %125 = vector.extract_strided_slice %124 {offsets = [0, 0], sizes = [2, 96], strides = [1, 1]} : vector<2x128xf32> to vector<2x96xf32>
    %126 = arith.negf %125 : vector<2x96xf32>
    %127 = math.exp %126 : vector<2x96xf32>
    %cst_34 = arith.constant 1.000000e+00 : f32
    %128 = vector.broadcast %cst_34 : f32 to vector<2x96xf32>
    %129 = arith.addf %128, %127 : vector<2x96xf32>
    %130 = arith.divf %128, %129 : vector<2x96xf32>
    %131 = vector.extract_strided_slice %130 {offsets = [0, 0], sizes = [2, 32], strides = [1, 1]} : vector<2x96xf32> to vector<2x32xf32>
    %132 = vector.extract_strided_slice %130 {offsets = [0, 32], sizes = [2, 32], strides = [1, 1]} : vector<2x96xf32> to vector<2x32xf32>
    %133 = vector.extract_strided_slice %130 {offsets = [0, 64], sizes = [2, 32], strides = [1, 1]} : vector<2x96xf32> to vector<2x32xf32>
    %134 = vector.extract_strided_slice %124 {offsets = [0, 96], sizes = [2, 32], strides = [1, 1]} : vector<2x128xf32> to vector<2x32xf32>
    %135 = math.tanh %134 : vector<2x32xf32>
    %136 = arith.mulf %132, %116 : vector<2x32xf32>
    %137 = arith.mulf %131, %135 : vector<2x32xf32>
    %138 = arith.addf %136, %137 : vector<2x32xf32>
    %139 = math.tanh %138 : vector<2x32xf32>
    %140 = arith.mulf %133, %139 : vector<2x32xf32>
    %141 = arith.truncf %140 : vector<2x32xf32> to vector<2x32xbf16>
    %c6_i32 = arith.constant 6 : i32
    %c2_i32_35 = arith.constant 2 : i32
    %142 = arith.muli %c6_i32, %c2_i32_35 : i32
    %143 = arith.index_cast %142 : i32 to index
    %c0_36 = arith.constant 0 : index
    %144 = vector.load %arg7[%143, %c0_36] : memref<16x128xf32, #tpu.memory_space<vmem>>, vector<2x128xf32>
    %cst_37 = arith.constant dense<0.000000e+00> : vector<2x128xf32>
    %145 = tpu.matmul %141, %0, %cst_37 {dimension_numbers = #tpu.dot_dimension_numbers<[1], [0], [0], [1], [0, 0, 1, 1], [], []>} : vector<2x32xbf16>, vector<32x128xbf16>, vector<2x128xf32> -> vector<2x128xf32>
    %146 = arith.addf %144, %145 : vector<2x128xf32>
    %147 = vector.extract_strided_slice %146 {offsets = [0, 0], sizes = [2, 96], strides = [1, 1]} : vector<2x128xf32> to vector<2x96xf32>
    %148 = arith.negf %147 : vector<2x96xf32>
    %149 = math.exp %148 : vector<2x96xf32>
    %cst_38 = arith.constant 1.000000e+00 : f32
    %150 = vector.broadcast %cst_38 : f32 to vector<2x96xf32>
    %151 = arith.addf %150, %149 : vector<2x96xf32>
    %152 = arith.divf %150, %151 : vector<2x96xf32>
    %153 = vector.extract_strided_slice %152 {offsets = [0, 0], sizes = [2, 32], strides = [1, 1]} : vector<2x96xf32> to vector<2x32xf32>
    %154 = vector.extract_strided_slice %152 {offsets = [0, 32], sizes = [2, 32], strides = [1, 1]} : vector<2x96xf32> to vector<2x32xf32>
    %155 = vector.extract_strided_slice %152 {offsets = [0, 64], sizes = [2, 32], strides = [1, 1]} : vector<2x96xf32> to vector<2x32xf32>
    %156 = vector.extract_strided_slice %146 {offsets = [0, 96], sizes = [2, 32], strides = [1, 1]} : vector<2x128xf32> to vector<2x32xf32>
    %157 = math.tanh %156 : vector<2x32xf32>
    %158 = arith.mulf %154, %138 : vector<2x32xf32>
    %159 = arith.mulf %153, %157 : vector<2x32xf32>
    %160 = arith.addf %158, %159 : vector<2x32xf32>
    %161 = math.tanh %160 : vector<2x32xf32>
    %162 = arith.mulf %155, %161 : vector<2x32xf32>
    %163 = arith.truncf %162 : vector<2x32xf32> to vector<2x32xbf16>
    %c7_i32 = arith.constant 7 : i32
    %c2_i32_39 = arith.constant 2 : i32
    %164 = arith.muli %c7_i32, %c2_i32_39 : i32
    %165 = arith.index_cast %164 : i32 to index
    %c0_40 = arith.constant 0 : index
    %166 = vector.load %arg7[%165, %c0_40] : memref<16x128xf32, #tpu.memory_space<vmem>>, vector<2x128xf32>
    %cst_41 = arith.constant dense<0.000000e+00> : vector<2x128xf32>
    %167 = tpu.matmul %163, %0, %cst_41 {dimension_numbers = #tpu.dot_dimension_numbers<[1], [0], [0], [1], [0, 0, 1, 1], [], []>} : vector<2x32xbf16>, vector<32x128xbf16>, vector<2x128xf32> -> vector<2x128xf32>
    %168 = arith.addf %166, %167 : vector<2x128xf32>
    %169 = vector.extract_strided_slice %168 {offsets = [0, 0], sizes = [2, 96], strides = [1, 1]} : vector<2x128xf32> to vector<2x96xf32>
    %170 = arith.negf %169 : vector<2x96xf32>
    %171 = math.exp %170 : vector<2x96xf32>
    %cst_42 = arith.constant 1.000000e+00 : f32
    %172 = vector.broadcast %cst_42 : f32 to vector<2x96xf32>
    %173 = arith.addf %172, %171 : vector<2x96xf32>
    %174 = arith.divf %172, %173 : vector<2x96xf32>
    %175 = vector.extract_strided_slice %174 {offsets = [0, 0], sizes = [2, 32], strides = [1, 1]} : vector<2x96xf32> to vector<2x32xf32>
    %176 = vector.extract_strided_slice %174 {offsets = [0, 32], sizes = [2, 32], strides = [1, 1]} : vector<2x96xf32> to vector<2x32xf32>
    %177 = vector.extract_strided_slice %174 {offsets = [0, 64], sizes = [2, 32], strides = [1, 1]} : vector<2x96xf32> to vector<2x32xf32>
    %178 = vector.extract_strided_slice %168 {offsets = [0, 96], sizes = [2, 32], strides = [1, 1]} : vector<2x128xf32> to vector<2x32xf32>
    %179 = math.tanh %178 : vector<2x32xf32>
    %180 = arith.mulf %176, %160 : vector<2x32xf32>
    %181 = arith.mulf %175, %179 : vector<2x32xf32>
    %182 = arith.addf %180, %181 : vector<2x32xf32>
    %183 = math.tanh %182 : vector<2x32xf32>
    %184 = arith.mulf %177, %183 : vector<2x32xf32>
    %185 = arith.truncf %184 : vector<2x32xf32> to vector<2x32xbf16>
    %c8_i32 = arith.constant 8 : i32
    %186 = arith.extf %185 : vector<2x32xbf16> to vector<2x32xf32>
    %c0_43 = arith.constant 0 : index
    %c0_44 = arith.constant 0 : index
    %187 = vector.load %arg4[%c0_43, %c0_44] : memref<32x8xf32, #tpu.memory_space<vmem>>, vector<32x8xf32>
    %cst_45 = arith.constant dense<0.000000e+00> : vector<2x8xf32>
    %188 = tpu.matmul %186, %187, %cst_45 {dimension_numbers = #tpu.dot_dimension_numbers<[1], [0], [0], [1], [0, 0, 1, 1], [], []>} : vector<2x32xf32>, vector<32x8xf32>, vector<2x8xf32> -> vector<2x8xf32>
    %c0_46 = arith.constant 0 : index
    %c0_47 = arith.constant 0 : index
    %189 = vector.load %arg5[%c0_46, %c0_47] : memref<1x8xf32, #tpu.memory_space<vmem>>, vector<1x8xf32>
    %190 = vector.broadcast %189 : vector<1x8xf32> to vector<2x8xf32>
    %191 = arith.addf %188, %190 : vector<2x8xf32>
    %192 = tpu.iota {dimensions = array<i32: 1>} : vector<2x8xi32>
    %c4_i32_48 = arith.constant 4 : i32
    %193 = vector.broadcast %c4_i32_48 : i32 to vector<2x8xi32>
    %194 = arith.cmpi sge, %192, %193 : vector<2x8xi32>
    %195 = math.exp %191 : vector<2x8xf32>
    %196 = arith.select %194, %195, %191 : vector<2x8xi1>, vector<2x8xf32>
    %c0_49 = arith.constant 0 : index
    %c0_50 = arith.constant 0 : index
    %197 = vector.load %arg6[%c0_49, %c0_50] : memref<2x8xf32, #tpu.memory_space<vmem>>, vector<2x8xf32>
    tpu.vector_store %arg6[%c0_49, %c0_50], %196 {strides = array<i32>} : memref<2x8xf32, #tpu.memory_space<vmem>>, vector<2x8xf32>,
    return
  }
}

</mosaic_0001>

<llo_original>
// kernel: tpu_custom_call.1
$region0: #{tpu_custom_call.1}
  #allocation0 [shape = 'u32[]', space=smem, size = 0x4, offset = 0x4, fixed_abs, tag = 'smem constant byte address 0x4 - core index']
  #allocation1 [shape = 'u32[144,128]{1,0:T(1,128)}', space=vmem, size = 0x12000, scoped, tag = 'internal scratch']
  #allocation2 [shape = 'f32[16,128]{1,0:T(8,128)}', space=vmem, size = 0x2000, scoped, tag = 'scratch operand']
  %s0 = inlined_call_operand.vmem [shape: bf16[16,4], index: 0, kind: input, shape index: {}]
  %s1 = inlined_call_operand.vmem [shape: bf16[4,128], index: 1, kind: input, shape index: {}]
  %s2 = inlined_call_operand.vmem [shape: bf16[32,128], index: 2, kind: input, shape index: {}]
  %s3 = inlined_call_operand.vmem [shape: f32[1,128], index: 3, kind: input, shape index: {}]
  %s4 = inlined_call_operand.vmem [shape: f32[32,8], index: 4, kind: input, shape index: {}]
  %s5 = inlined_call_operand.vmem [shape: f32[1,8], index: 5, kind: input, shape index: {}]
  %s6 = inlined_call_operand.hbm [shape: f32[2,8], index: 6, kind: output, shape index: {}]
  %s7 = sld [smem:[#allocation0]]
  $region34: #{tpu_custom_call.1} parent=0
    _
  %s9 = ssub.s32 1, %s7
  %s10 = scalar_select 0, %s9, %s7
  $region1: #{tpu_custom_call.1} parent=0
    #allocation3 [shape = 'u8[1024]{0}', space=vmem, size = 0x400, scoped, tag = 'output window, operand 0, single buffered']
    #allocation4 [shape = 's32[1]{0}', space=sflag, size = 0x4, scoped, tag = 'scoped memory for tpu_custom_call.1']
    %11 = vsyncpa [#allocation4], 0
    // Predicated region
    $region2: #{tpu_custom_call.1} parent=1 // pred_check
      _
    $region3: #{tpu_custom_call.1} parent=1 // pred_check_branch
      %13 = sbr.rel (0) target = $region5
    $region4: #{tpu_custom_call.1} parent=1 // pred_region
      _
    $region5: #{tpu_custom_call.1} parent=1 // pred_fallthru
      _
    // Predicated region
    $region6: #{tpu_custom_call.1} parent=1 // pred_check
      _
    $region7: #{tpu_custom_call.1} parent=1 // pred_check_branch
      %15 = sbr.rel (0) target = $region9
    $region8: #{tpu_custom_call.1} parent=1 // pred_region
      _
    $region9: #{tpu_custom_call.1} parent=1 // pred_fallthru
      _
    // Predicated region
    $region10: #{tpu_custom_call.1} parent=1 // pred_check
      _
    $region11: #{tpu_custom_call.1} parent=1 // pred_check_branch
      %17 = sbr.rel (0) target = $region13
    $region12: #{tpu_custom_call.1} parent=1 // pred_region
      _
    $region13: #{tpu_custom_call.1} parent=1 // pred_fallthru
      _
    // Predicated region
    $region14: #{tpu_custom_call.1} parent=1 // pred_check
      _
    $region15: #{tpu_custom_call.1} parent=1 // pred_check_branch
      %19 = sbr.rel (0) target = $region17
    $region16: #{tpu_custom_call.1} parent=1 // pred_region
      _
    $region17: #{tpu_custom_call.1} parent=1 // pred_fallthru
      _
    // Predicated region
    $region18: #{tpu_custom_call.1} parent=1 // pred_check
      _
    $region19: #{tpu_custom_call.1} parent=1 // pred_check_branch
      %21 = sbr.rel (0) target = $region21
    $region20: #{tpu_custom_call.1} parent=1 // pred_region
      _
    $region21: #{tpu_custom_call.1} parent=1 // pred_fallthru
      _
    // Predicated region
    $region22: #{tpu_custom_call.1} parent=1 // pred_check
      _
    $region23: #{tpu_custom_call.1} parent=1 // pred_check_branch
      %23 = sbr.rel (0) target = $region25
    $region24: #{tpu_custom_call.1} parent=1 // pred_region
      _
    $region25: #{tpu_custom_call.1} parent=1 // pred_fallthru
      _
    %v25 = vld [vmem:[%s2] sm:$0xf]
    %v26 = vld [vmem:[%s2 + $0x4] sm:$0xf]
    %v27 = vld [vmem:[%s2 + $0x8] sm:$0xf]
    %v28 = vld [vmem:[%s2 + $0xc] sm:$0xf]
    %v29 = vld [vmem:[%s0] sm:$0xf]
    %v30 = vld [vmem:[%s0 + $0x4] sm:$0xf]
    %v31 = vld [vmem:[%s1] sm:$0x3]
    %v32 = vld [vmem:[%s3] sm:$0x1]
    %v34 = vlaneseq
    %v35 = vshrl.u32 %v34, 7
    %v36 = vsub.s32 0, %v35
    %v37 = vrot.slane %v32, %v36
    %v41 = vunpack.c.l.b16 %v29
    %v42 = vunpack.c.l.b16 %v30
    %v43 = vpack.c.b16 %v42, %v41
    %vm44 = vcmask 31744
    %v46 = vsel %vm44, %v43, 0
    %vm48 = vcmask 1041408
    %v50 = vsel %vm48, %v31, 0
    %52 = vmatprep.subr.bf16.mxu0 0
    %53 = vmatpush1.bf16.msra.mxu0 %v50
    %54 = vmatprep.subr.bf16.mxu0 0
    %55 = vmatpush1.bf16.msra.mxu0 0
    %56 = vmatprep.subr.bf16.mxu0 0
    %57 = vmatpush1.bf16.msra.mxu0 0
    %58 = vmatprep.subr.bf16.mxu0 0
    %59 = vmatpush1.bf16.msra.mxu0 0
    %60 = vmatprep.subr.bf16.mxu0 0
    %61 = vmatpush1.bf16.msra.mxu0 0
    %62 = vmatprep.subr.bf16.mxu0 0
    %63 = vmatpush1.bf16.msra.mxu0 0
    %64 = vmatprep.subr.bf16.mxu0 0
    %65 = vmatpush1.bf16.msra.mxu0 0
    %66 = vmatprep.subr.bf16.mxu0 0
    %67 = vmatpush1.bf16.msra.mxu0 0
    %68 = vmatprep.subr.bf16.mxu0 0
    %69 = vmatpush1.bf16.msra.mxu0 0
    %70 = vmatprep.subr.bf16.mxu0 0
    %71 = vmatpush1.bf16.msra.mxu0 0
    %72 = vmatprep.subr.bf16.mxu0 0
    %73 = vmatpush1.bf16.msra.mxu0 0
    %74 = vmatprep.subr.bf16.mxu0 0
    %75 = vmatpush1.bf16.msra.mxu0 0
    %76 = vmatprep.subr.bf16.mxu0 0
    %77 = vmatpush1.bf16.msra.mxu0 0
    %78 = vmatprep.subr.bf16.mxu0 0
    %79 = vmatpush1.bf16.msra.mxu0 0
    %80 = vmatprep.subr.bf16.mxu0 0
    %81 = vmatpush1.bf16.msra.mxu0 0
    %82 = vmatprep.subr.bf16.mxu0 0
    %83 = vmatpush1.bf16.msra.mxu0 0
    %84 = vmatprep.mubr.bf16.mxu0 0
    %85 = vmatmul.mubr.bf16.gmra.mrb[0].mxu0 %v46
    %v86 = vpop.f32.mrb[0].mxu0
    %v87 = vadd.f32 %v37, %v86
    %v88 = vpop.f32.mrb[0].mxu0
    %v89 = vpop.f32.mrb[0].mxu0
    %v90 = vadd.f32 %v37, %v89
    %v91 = vpop.f32.mrb[0].mxu0
    %92 = vdwg.mxu0
    %93 = vst [vmem:[#allocation2] sm:$0xff] %v87
    %94 = vst [vmem:[#allocation2 + $0x8] sm:$0xff] %v90
    %v95 = vld [vmem:[#allocation2] sm:$0x3]
    %v100 = vunpack.c.l.b16 %v25
    %v101 = vunpack.c.l.b16 %v26
    %v102 = vunpack.c.l.b16 %v27
    %v103 = vunpack.c.l.b16 %v28
    %v104 = vpack.c.b16 %v101, %v100
    %v105 = vpack.c.b16 %v103, %v102
    %vm108 = vcmask 261120
    %v110 = vsel %vm108, 0, 0
    %112 = vmatprep.subr.bf16.mxu0 0
    %113 = vmatpush1.bf16.msra.mxu0 %v104
    %114 = vmatprep.subr.bf16.mxu0 0
    %115 = vmatpush1.bf16.msra.mxu0 %v105
    %116 = vmatprep.subr.bf16.mxu0 0
    %117 = vmatpush1.bf16.msra.mxu0 0
    %118 = vmatprep.subr.bf16.mxu0 0
    %119 = vmatpush1.bf16.msra.mxu0 0
    %120 = vmatprep.subr.bf16.mxu0 0
    %121 = vmatpush1.bf16.msra.mxu0 0
    %122 = vmatprep.subr.bf16.mxu0 0
    %123 = vmatpush1.bf16.msra.mxu0 0
    %124 = vmatprep.subr.bf16.mxu0 0
    %125 = vmatpush1.bf16.msra.mxu0 0
    %126 = vmatprep.subr.bf16.mxu0 0
    %127 = vmatpush1.bf16.msra.mxu0 0
    %128 = vmatprep.subr.bf16.mxu0 0
    %129 = vmatpush1.bf16.msra.mxu0 0
    %130 = vmatprep.subr.bf16.mxu0 0
    %131 = vmatpush1.bf16.msra.mxu0 0
    %132 = vmatprep.subr.bf16.mxu0 0
    %133 = vmatpush1.bf16.msra.mxu0 0
    %134 = vmatprep.subr.bf16.mxu0 0
    %135 = vmatpush1.bf16.msra.mxu0 0
    %136 = vmatprep.subr.bf16.mxu0 0
    %137 = vmatpush1.bf16.msra.mxu0 0
    %138 = vmatprep.subr.bf16.mxu0 0
    %139 = vmatpush1.bf16.msra.mxu0 0
    %140 = vmatprep.subr.bf16.mxu0 0
    %141 = vmatpush1.bf16.msra.mxu0 0
    %142 = vmatprep.subr.bf16.mxu0 0
    %143 = vmatpush1.bf16.msra.mxu0 0
    %144 = vmatprep.mubr.bf16.mxu0 0
    %145 = vmatmul.mubr.bf16.gmra.mrb[0].mxu0 %v110
    %v146 = vpop.f32.mrb[0].mxu0
    %v147 = vadd.f32 0.0, %v146
    %v148 = vpop.f32.mrb[0].mxu0
    %v149 = vpop.f32.mrb[0].mxu0
    %v150 = vpop.f32.mrb[0].mxu0
    %151 = vdwg.mxu0
    %v152 = vadd.f32 %v95, %v147
    %v153 = vxor.u32 %v152, 2147483648
    %v154 = vmul.f32 %v153, 1.442695
    %v155 = vpow.pop %v154
    %v156 = vadd.f32 %v155, 1.0
    %v157 = vrcp.pop %v156
    %v158 = vmul.f32 1.0, %v157
    %v159 = vtanh.pop %v152
    %v160 = vmul.f32 %v158, 0.0
    %162 = vrot.lane.b32.xlu0 %v159, 32
    %v163 = vpop.permute.xlu0 %162
    %v165 = vmul.f32 %v158, %v163
    %167 = vrot.lane.b32.xlu0 %v165, 32
    %v168 = vpop.permute.xlu0 %167
    %v170 = vadd.f32 %v160, %v168
    %v171 = vtanh.pop %v170
    %173 = vrot.lane.b32.xlu0 %v171, 32
    %v174 = vpop.permute.xlu0 %173
    %v176 = vmul.f32 %v158, %v174
    %v177 = vpack.c.bf16 %v176, %v176
    %v178 = vld [vmem:[#allocation2 + $0x2] sm:$0x3]
    %180 = vrot.lane.b32.xlu0 %v177, 64
    %v181 = vpop.permute.xlu0 %180
    %v183 = vsel %vm108, %v181, 0
    %185 = vmatprep.subr.bf16.mxu0 0
    %186 = vmatpush1.bf16.msra.mxu0 %v104
    %187 = vmatprep.subr.bf16.mxu0 0
    %188 = vmatpush1.bf16.msra.mxu0 %v105
    %189 = vmatprep.subr.bf16.mxu0 0
    %190 = vmatpush1.bf16.msra.mxu0 0
    %191 = vmatprep.subr.bf16.mxu0 0
    %192 = vmatpush1.bf16.msra.mxu0 0
    %193 = vmatprep.subr.bf16.mxu0 0
    %194 = vmatpush1.bf16.msra.mxu0 0
    %195 = vmatprep.subr.bf16.mxu0 0
    %196 = vmatpush1.bf16.msra.mxu0 0
    %197 = vmatprep.subr.bf16.mxu0 0
    %198 = vmatpush1.bf16.msra.mxu0 0
    %199 = vmatprep.subr.bf16.mxu0 0
    %200 = vmatpush1.bf16.msra.mxu0 0
    %201 = vmatprep.subr.bf16.mxu0 0
    %202 = vmatpush1.bf16.msra.mxu0 0
    %203 = vmatprep.subr.bf16.mxu0 0
    %204 = vmatpush1.bf16.msra.mxu0 0
    %205 = vmatprep.subr.bf16.mxu0 0
    %206 = vmatpush1.bf16.msra.mxu0 0
    %207 = vmatprep.subr.bf16.mxu0 0
    %208 = vmatpush1.bf16.msra.mxu0 0
    %209 = vmatprep.subr.bf16.mxu0 0
    %210 = vmatpush1.bf16.msra.mxu0 0
    %211 = vmatprep.subr.bf16.mxu0 0
    %212 = vmatpush1.bf16.msra.mxu0 0
    %213 = vmatprep.subr.bf16.mxu0 0
    %214 = vmatpush1.bf16.msra.mxu0 0
    %215 = vmatprep.subr.bf16.mxu0 0
    %216 = vmatpush1.bf16.msra.mxu0 0
    %217 = vmatprep.mubr.bf16.mxu0 0
    %218 = vmatmul.mubr.bf16.gmra.mrb[0].mxu0 %v183
    %v219 = vpop.f32.mrb[0].mxu0
    %v220 = vadd.f32 0.0, %v219
    %v221 = vpop.f32.mrb[0].mxu0
    %v222 = vpop.f32.mrb[0].mxu0
    %v223 = vpop.f32.mrb[0].mxu0
    %224 = vdwg.mxu0
    %v225 = vadd.f32 %v178, %v220
    %v226 = vxor.u32 %v225, 2147483648
    %v227 = vmul.f32 %v226, 1.442695
    %v228 = vpow.pop %v227
    %v229 = vadd.f32 %v228, 1.0
    %v230 = vrcp.pop %v229
    %v231 = vmul.f32 1.0, %v230
    %v232 = vtanh.pop %v225
    %v233 = vmul.f32 %v231, %v170
    %235 = vrot.lane.b32.xlu0 %v232, 32
    %v236 = vpop.permute.xlu0 %235
    %v238 = vmul.f32 %v231, %v236
    %240 = vrot.lane.b32.xlu0 %v238, 32
    %v241 = vpop.permute.xlu0 %240
    %v243 = vadd.f32 %v233, %v241
    %v244 = vtanh.pop %v243
    %246 = vrot.lane.b32.xlu0 %v244, 32
    %v247 = vpop.permute.xlu0 %246
    %v249 = vmul.f32 %v231, %v247
    %v250 = vpack.c.bf16 %v249, %v249
    %v251 = vld [vmem:[#allocation2 + $0x4] sm:$0x3]
    %253 = vrot.lane.b32.xlu0 %v250, 64
    %v254 = vpop.permute.xlu0 %253
    %v256 = vsel %vm108, %v254, 0
    %258 = vmatprep.subr.bf16.mxu0 0
    %259 = vmatpush1.bf16.msra.mxu0 %v104
    %260 = vmatprep.subr.bf16.mxu0 0
    %261 = vmatpush1.bf16.msra.mxu0 %v105
    %262 = vmatprep.subr.bf16.mxu0 0
    %263 = vmatpush1.bf16.msra.mxu0 0
    %264 = vmatprep.subr.bf16.mxu0 0
    %265 = vmatpush1.bf16.msra.mxu0 0
    %266 = vmatprep.subr.bf16.mxu0 0
    %267 = vmatpush1.bf16.msra.mxu0 0
    %268 = vmatprep.subr.bf16.mxu0 0
    %269 = vmatpush1.bf16.msra.mxu0 0
    %270 = vmatprep.subr.bf16.mxu0 0
    %271 = vmatpush1.bf16.msra.mxu0 0
    %272 = vmatprep.subr.bf16.mxu0 0
    %273 = vmatpush1.bf16.msra.mxu0 0
    %274 = vmatprep.subr.bf16.mxu0 0
    %275 = vmatpush1.bf16.msra.mxu0 0
    %276 = vmatprep.subr.bf16.mxu0 0
    %277 = vmatpush1.bf16.msra.mxu0 0
    %278 = vmatprep.subr.bf16.mxu0 0
    %279 = vmatpush1.bf16.msra.mxu0 0
    %280 = vmatprep.subr.bf16.mxu0 0
    %281 = vmatpush1.bf16.msra.mxu0 0
    %282 = vmatprep.subr.bf16.mxu0 0
    %283 = vmatpush1.bf16.msra.mxu0 0
    %284 = vmatprep.subr.bf16.mxu0 0
    %285 = vmatpush1.bf16.msra.mxu0 0
    %286 = vmatprep.subr.bf16.mxu0 0
    %287 = vmatpush1.bf16.msra.mxu0 0
    %288 = vmatprep.subr.bf16.mxu0 0
    %289 = vmatpush1.bf16.msra.mxu0 0
    %290 = vmatprep.mubr.bf16.mxu0 0
    %291 = vmatmul.mubr.bf16.gmra.mrb[0].mxu0 %v256
    %v292 = vpop.f32.mrb[0].mxu0
    %v293 = vadd.f32 0.0, %v292
    %v294 = vpop.f32.mrb[0].mxu0
    %v295 = vpop.f32.mrb[0].mxu0
    %v296 = vpop.f32.mrb[0].mxu0
    %297 = vdwg.mxu0
    %v298 = vadd.f32 %v251, %v293
    %v299 = vxor.u32 %v298, 2147483648
    %v300 = vmul.f32 %v299, 1.442695
    %v301 = vpow.pop %v300
    %v302 = vadd.f32 %v301, 1.0
    %v303 = vrcp.pop %v302
    %v304 = vmul.f32 1.0, %v303
    %v305 = vtanh.pop %v298
    %v306 = vmul.f32 %v304, %v243
    %308 = vrot.lane.b32.xlu0 %v305, 32
    %v309 = vpop.permute.xlu0 %308
    %v311 = vmul.f32 %v304, %v309
    %313 = vrot.lane.b32.xlu0 %v311, 32
    %v314 = vpop.permute.xlu0 %313
    %v316 = vadd.f32 %v306, %v314
    %v317 = vtanh.pop %v316
    %319 = vrot.lane.b32.xlu0 %v317, 32
    %v320 = vpop.permute.xlu0 %319
    %v322 = vmul.f32 %v304, %v320
    %v323 = vpack.c.bf16 %v322, %v322
    %v324 = vld [vmem:[#allocation2 + $0x6] sm:$0x3]
    %326 = vrot.lane.b32.xlu0 %v323, 64
    %v327 = vpop.permute.xlu0 %326
    %v329 = vsel %vm108, %v327, 0
    %331 = vmatprep.subr.bf16.mxu0 0
    %332 = vmatpush1.bf16.msra.mxu0 %v104
    %333 = vmatprep.subr.bf16.mxu0 0
    %334 = vmatpush1.bf16.msra.mxu0 %v105
    %335 = vmatprep.subr.bf16.mxu0 0
    %336 = vmatpush1.bf16.msra.mxu0 0
    %337 = vmatprep.subr.bf16.mxu0 0
    %338 = vmatpush1.bf16.msra.mxu0 0
    %339 = vmatprep.subr.bf16.mxu0 0
    %340 = vmatpush1.bf16.msra.mxu0 0
    %341 = vmatprep.subr.bf16.mxu0 0
    %342 = vmatpush1.bf16.msra.mxu0 0
    %343 = vmatprep.subr.bf16.mxu0 0
    %344 = vmatpush1.bf16.msra.mxu0 0
    %345 = vmatprep.subr.bf16.mxu0 0
    %346 = vmatpush1.bf16.msra.mxu0 0
    %347 = vmatprep.subr.bf16.mxu0 0
    %348 = vmatpush1.bf16.msra.mxu0 0
    %349 = vmatprep.subr.bf16.mxu0 0
    %350 = vmatpush1.bf16.msra.mxu0 0
    %351 = vmatprep.subr.bf16.mxu0 0
    %352 = vmatpush1.bf16.msra.mxu0 0
    %353 = vmatprep.subr.bf16.mxu0 0
    %354 = vmatpush1.bf16.msra.mxu0 0
    %355 = vmatprep.subr.bf16.mxu0 0
    %356 = vmatpush1.bf16.msra.mxu0 0
    %357 = vmatprep.subr.bf16.mxu0 0
    %358 = vmatpush1.bf16.msra.mxu0 0
    %359 = vmatprep.subr.bf16.mxu0 0
    %360 = vmatpush1.bf16.msra.mxu0 0
    %361 = vmatprep.subr.bf16.mxu0 0
    %362 = vmatpush1.bf16.msra.mxu0 0
    %363 = vmatprep.mubr.bf16.mxu0 0
    %364 = vmatmul.mubr.bf16.gmra.mrb[0].mxu0 %v329
    %v365 = vpop.f32.mrb[0].mxu0
    %v366 = vadd.f32 0.0, %v365
    %v367 = vpop.f32.mrb[0].mxu0
    %v368 = vpop.f32.mrb[0].mxu0
    %v369 = vpop.f32.mrb[0].mxu0
    %370 = vdwg.mxu0
    %v371 = vadd.f32 %v324, %v366
    %v372 = vxor.u32 %v371, 2147483648
    %v373 = vmul.f32 %v372, 1.442695
    %v374 = vpow.pop %v373
    %v375 = vadd.f32 %v374, 1.0
    %v376 = vrcp.pop %v375
    %v377 = vmul.f32 1.0, %v376
    %v378 = vtanh.pop %v371
    %v379 = vmul.f32 %v377, %v316
    %381 = vrot.lane.b32.xlu0 %v378, 32
    %v382 = vpop.permute.xlu0 %381
    %v384 = vmul.f32 %v377, %v382
    %386 = vrot.lane.b32.xlu0 %v384, 32
    %v387 = vpop.permute.xlu0 %386
    %v389 = vadd.f32 %v379, %v387
    %v390 = vtanh.pop %v389
    %392 = vrot.lane.b32.xlu0 %v390, 32
    %v393 = vpop.permute.xlu0 %392
    %v395 = vmul.f32 %v377, %v393
    %v396 = vpack.c.bf16 %v395, %v395
    %v397 = vld [vmem:[#allocation2 + $0x8] sm:$0x3]
    %399 = vrot.lane.b32.xlu0 %v396, 64
    %v400 = vpop.permute.xlu0 %399
    %v402 = vsel %vm108, %v400, 0
    %404 = vmatprep.subr.bf16.mxu0 0
    %405 = vmatpush1.bf16.msra.mxu0 %v104
    %406 = vmatprep.subr.bf16.mxu0 0
    %407 = vmatpush1.bf16.msra.mxu0 %v105
    %408 = vmatprep.subr.bf16.mxu0 0
    %409 = vmatpush1.bf16.msra.mxu0 0
    %410 = vmatprep.subr.bf16.mxu0 0
    %411 = vmatpush1.bf16.msra.mxu0 0
    %412 = vmatprep.subr.bf16.mxu0 0
    %413 = vmatpush1.bf16.msra.mxu0 0
    %414 = vmatprep.subr.bf16.mxu0 0
    %415 = vmatpush1.bf16.msra.mxu0 0
    %416 = vmatprep.subr.bf16.mxu0 0
    %417 = vmatpush1.bf16.msra.mxu0 0
    %418 = vmatprep.subr.bf16.mxu0 0
    %419 = vmatpush1.bf16.msra.mxu0 0
    %420 = vmatprep.subr.bf16.mxu0 0
    %421 = vmatpush1.bf16.msra.mxu0 0
    %422 = vmatprep.subr.bf16.mxu0 0
    %423 = vmatpush1.bf16.msra.mxu0 0
    %424 = vmatprep.subr.bf16.mxu0 0
    %425 = vmatpush1.bf16.msra.mxu0 0
    %426 = vmatprep.subr.bf16.mxu0 0
    %427 = vmatpush1.bf16.msra.mxu0 0
    %428 = vmatprep.subr.bf16.mxu0 0
    %429 = vmatpush1.bf16.msra.mxu0 0
    %430 = vmatprep.subr.bf16.mxu0 0
    %431 = vmatpush1.bf16.msra.mxu0 0
    %432 = vmatprep.subr.bf16.mxu0 0
    %433 = vmatpush1.bf16.msra.mxu0 0
    %434 = vmatprep.subr.bf16.mxu0 0
    %435 = vmatpush1.bf16.msra.mxu0 0
    %436 = vmatprep.mubr.bf16.mxu0 0
    %437 = vmatmul.mubr.bf16.gmra.mrb[0].mxu0 %v402
    %v438 = vpop.f32.mrb[0].mxu0
    %v439 = vadd.f32 0.0, %v438
    %v440 = vpop.f32.mrb[0].mxu0
    %v441 = vpop.f32.mrb[0].mxu0
    %v442 = vpop.f32.mrb[0].mxu0
    %443 = vdwg.mxu0
    %v444 = vadd.f32 %v397, %v439
    %v445 = vxor.u32 %v444, 2147483648
    %v446 = vmul.f32 %v445, 1.442695
    %v447 = vpow.pop %v446
    %v448 = vadd.f32 %v447, 1.0
    %v449 = vrcp.pop %v448
    %v450 = vmul.f32 1.0, %v449
    %v451 = vtanh.pop %v444
    %v452 = vmul.f32 %v450, %v389
    %454 = vrot.lane.b32.xlu0 %v451, 32
    %v455 = vpop.permute.xlu0 %454
    %v457 = vmul.f32 %v450, %v455
    %459 = vrot.lane.b32.xlu0 %v457, 32
    %v460 = vpop.permute.xlu0 %459
    %v462 = vadd.f32 %v452, %v460
    %v463 = vtanh.pop %v462
    %465 = vrot.lane.b32.xlu0 %v463, 32
    %v466 = vpop.permute.xlu0 %465
    %v468 = vmul.f32 %v450, %v466
    %v469 = vpack.c.bf16 %v468, %v468
    %v470 = vld [vmem:[#allocation2 + $0xa] sm:$0x3]
    %472 = vrot.lane.b32.xlu0 %v469, 64
    %v473 = vpop.permute.xlu0 %472
    %v475 = vsel %vm108, %v473, 0
    %477 = vmatprep.subr.bf16.mxu0 0
    %478 = vmatpush1.bf16.msra.mxu0 %v104
    %479 = vmatprep.subr.bf16.mxu0 0
    %480 = vmatpush1.bf16.msra.mxu0 %v105
    %481 = vmatprep.subr.bf16.mxu0 0
    %482 = vmatpush1.bf16.msra.mxu0 0
    %483 = vmatprep.subr.bf16.mxu0 0
    %484 = vmatpush1.bf16.msra.mxu0 0
    %485 = vmatprep.subr.bf16.mxu0 0
    %486 = vmatpush1.bf16.msra.mxu0 0
    %487 = vmatprep.subr.bf16.mxu0 0
    %488 = vmatpush1.bf16.msra.mxu0 0
    %489 = vmatprep.subr.bf16.mxu0 0
    %490 = vmatpush1.bf16.msra.mxu0 0
    %491 = vmatprep.subr.bf16.mxu0 0
    %492 = vmatpush1.bf16.msra.mxu0 0
    %493 = vmatprep.subr.bf16.mxu0 0
    %494 = vmatpush1.bf16.msra.mxu0 0
    %495 = vmatprep.subr.bf16.mxu0 0
    %496 = vmatpush1.bf16.msra.mxu0 0
    %497 = vmatprep.subr.bf16.mxu0 0
    %498 = vmatpush1.bf16.msra.mxu0 0
    %499 = vmatprep.subr.bf16.mxu0 0
    %500 = vmatpush1.bf16.msra.mxu0 0
    %501 = vmatprep.subr.bf16.mxu0 0
    %502 = vmatpush1.bf16.msra.mxu0 0
    %503 = vmatprep.subr.bf16.mxu0 0
    %504 = vmatpush1.bf16.msra.mxu0 0
    %505 = vmatprep.subr.bf16.mxu0 0
    %506 = vmatpush1.bf16.msra.mxu0 0
    %507 = vmatprep.subr.bf16.mxu0 0
    %508 = vmatpush1.bf16.msra.mxu0 0
    %509 = vmatprep.mubr.bf16.mxu0 0
    %510 = vmatmul.mubr.bf16.gmra.mrb[0].mxu0 %v475
    %v511 = vpop.f32.mrb[0].mxu0
    %v512 = vadd.f32 0.0, %v511
    %v513 = vpop.f32.mrb[0].mxu0
    %v514 = vpop.f32.mrb[0].mxu0
    %v515 = vpop.f32.mrb[0].mxu0
    %516 = vdwg.mxu0
    %v517 = vadd.f32 %v470, %v512
    %v518 = vxor.u32 %v517, 2147483648
    %v519 = vmul.f32 %v518, 1.442695
    %v520 = vpow.pop %v519
    %v521 = vadd.f32 %v520, 1.0
    %v522 = vrcp.pop %v521
    %v523 = vmul.f32 1.0, %v522
    %v524 = vtanh.pop %v517
    %v525 = vmul.f32 %v523, %v462
    %527 = vrot.lane.b32.xlu0 %v524, 32
    %v528 = vpop.permute.xlu0 %527
    %v530 = vmul.f32 %v523, %v528
    %532 = vrot.lane.b32.xlu0 %v530, 32
    %v533 = vpop.permute.xlu0 %532
    %v535 = vadd.f32 %v525, %v533
    %v536 = vtanh.pop %v535
    %538 = vrot.lane.b32.xlu0 %v536, 32
    %v539 = vpop.permute.xlu0 %538
    %v541 = vmul.f32 %v523, %v539
    %v542 = vpack.c.bf16 %v541, %v541
    %v543 = vld [vmem:[#allocation2 + $0xc] sm:$0x3]
    %545 = vrot.lane.b32.xlu0 %v542, 64
    %v546 = vpop.permute.xlu0 %545
    %v548 = vsel %vm108, %v546, 0
    %550 = vmatprep.subr.bf16.mxu0 0
    %551 = vmatpush1.bf16.msra.mxu0 %v104
    %552 = vmatprep.subr.bf16.mxu0 0
    %553 = vmatpush1.bf16.msra.mxu0 %v105
    %554 = vmatprep.subr.bf16.mxu0 0
    %555 = vmatpush1.bf16.msra.mxu0 0
    %556 = vmatprep.subr.bf16.mxu0 0
    %557 = vmatpush1.bf16.msra.mxu0 0
    %558 = vmatprep.subr.bf16.mxu0 0
    %559 = vmatpush1.bf16.msra.mxu0 0
    %560 = vmatprep.subr.bf16.mxu0 0
    %561 = vmatpush1.bf16.msra.mxu0 0
    %562 = vmatprep.subr.bf16.mxu0 0
    %563 = vmatpush1.bf16.msra.mxu0 0
    %564 = vmatprep.subr.bf16.mxu0 0
    %565 = vmatpush1.bf16.msra.mxu0 0
    %566 = vmatprep.subr.bf16.mxu0 0
    %567 = vmatpush1.bf16.msra.mxu0 0
    %568 = vmatprep.subr.bf16.mxu0 0
    %569 = vmatpush1.bf16.msra.mxu0 0
    %570 = vmatprep.subr.bf16.mxu0 0
    %571 = vmatpush1.bf16.msra.mxu0 0
    %572 = vmatprep.subr.bf16.mxu0 0
    %573 = vmatpush1.bf16.msra.mxu0 0
    %574 = vmatprep.subr.bf16.mxu0 0
    %575 = vmatpush1.bf16.msra.mxu0 0
    %576 = vmatprep.subr.bf16.mxu0 0
    %577 = vmatpush1.bf16.msra.mxu0 0
    %578 = vmatprep.subr.bf16.mxu0 0
    %579 = vmatpush1.bf16.msra.mxu0 0
    %580 = vmatprep.subr.bf16.mxu0 0
    %581 = vmatpush1.bf16.msra.mxu0 0
    %582 = vmatprep.mubr.bf16.mxu0 0
    %583 = vmatmul.mubr.bf16.gmra.mrb[0].mxu0 %v548
    %v584 = vpop.f32.mrb[0].mxu0
    %v585 = vadd.f32 0.0, %v584
    %v586 = vpop.f32.mrb[0].mxu0
    %v587 = vpop.f32.mrb[0].mxu0
    %v588 = vpop.f32.mrb[0].mxu0
    %589 = vdwg.mxu0
    %v590 = vadd.f32 %v543, %v585
    %v591 = vxor.u32 %v590, 2147483648
    %v592 = vmul.f32 %v591, 1.442695
    %v593 = vpow.pop %v592
    %v594 = vadd.f32 %v593, 1.0
    %v595 = vrcp.pop %v594
    %v596 = vmul.f32 1.0, %v595
    %v597 = vtanh.pop %v590
    %v598 = vmul.f32 %v596, %v535
    %600 = vrot.lane.b32.xlu0 %v597, 32
    %v601 = vpop.permute.xlu0 %600
    %v603 = vmul.f32 %v596, %v601
    %605 = vrot.lane.b32.xlu0 %v603, 32
    %v606 = vpop.permute.xlu0 %605
    %v608 = vadd.f32 %v598, %v606
    %v609 = vtanh.pop %v608
    %611 = vrot.lane.b32.xlu0 %v609, 32
    %v612 = vpop.permute.xlu0 %611
    %v614 = vmul.f32 %v596, %v612
    %v615 = vpack.c.bf16 %v614, %v614
    %v616 = vld [vmem:[#allocation2 + $0xe] sm:$0x3]
    %618 = vrot.lane.b32.xlu0 %v615, 64
    %v619 = vpop.permute.xlu0 %618
    %v621 = vsel %vm108, %v619, 0
    %623 = vmatprep.subr.bf16.mxu0 0
    %624 = vmatpush1.bf16.msra.mxu0 %v104
    %625 = vmatprep.subr.bf16.mxu0 0
    %626 = vmatpush1.bf16.msra.mxu0 %v105
    %627 = vmatprep.subr.bf16.mxu0 0
    %628 = vmatpush1.bf16.msra.mxu0 0
    %629 = vmatprep.subr.bf16.mxu0 0
    %630 = vmatpush1.bf16.msra.mxu0 0
    %631 = vmatprep.subr.bf16.mxu0 0
    %632 = vmatpush1.bf16.msra.mxu0 0
    %633 = vmatprep.subr.bf16.mxu0 0
    %634 = vmatpush1.bf16.msra.mxu0 0
    %635 = vmatprep.subr.bf16.mxu0 0
    %636 = vmatpush1.bf16.msra.mxu0 0
    %637 = vmatprep.subr.bf16.mxu0 0
    %638 = vmatpush1.bf16.msra.mxu0 0
    %639 = vmatprep.subr.bf16.mxu0 0
    %640 = vmatpush1.bf16.msra.mxu0 0
    %641 = vmatprep.subr.bf16.mxu0 0
    %642 = vmatpush1.bf16.msra.mxu0 0
    %643 = vmatprep.subr.bf16.mxu0 0
    %644 = vmatpush1.bf16.msra.mxu0 0
    %645 = vmatprep.subr.bf16.mxu0 0
    %646 = vmatpush1.bf16.msra.mxu0 0
    %647 = vmatprep.subr.bf16.mxu0 0
    %648 = vmatpush1.bf16.msra.mxu0 0
    %649 = vmatprep.subr.bf16.mxu0 0
    %650 = vmatpush1.bf16.msra.mxu0 0
    %651 = vmatprep.subr.bf16.mxu0 0
    %652 = vmatpush1.bf16.msra.mxu0 0
    %653 = vmatprep.subr.bf16.mxu0 0
    %654 = vmatpush1.bf16.msra.mxu0 0
    %655 = vmatprep.mubr.bf16.mxu0 0
    %656 = vmatmul.mubr.bf16.gmra.mrb[0].mxu0 %v621
    %v657 = vpop.f32.mrb[0].mxu0
    %v658 = vadd.f32 0.0, %v657
    %v659 = vpop.f32.mrb[0].mxu0
    %v660 = vpop.f32.mrb[0].mxu0
    %v661 = vpop.f32.mrb[0].mxu0
    %662 = vdwg.mxu0
    %v663 = vadd.f32 %v616, %v658
    %v664 = vxor.u32 %v663, 2147483648
    %v665 = vmul.f32 %v664, 1.442695
    %v666 = vpow.pop %v665
    %v667 = vadd.f32 %v666, 1.0
    %v668 = vrcp.pop %v667
    %v669 = vmul.f32 1.0, %v668
    %v670 = vtanh.pop %v663
    %v671 = vmul.f32 %v669, %v608
    %673 = vrot.lane.b32.xlu0 %v670, 32
    %v674 = vpop.permute.xlu0 %673
    %v676 = vmul.f32 %v669, %v674
    %678 = vrot.lane.b32.xlu0 %v676, 32
    %v679 = vpop.permute.xlu0 %678
    %v681 = vadd.f32 %v671, %v679
    %v682 = vtanh.pop %v681
    %684 = vrot.lane.b32.xlu0 %v682, 32
    %v685 = vpop.permute.xlu0 %684
    %v687 = vmul.f32 %v669, %v685
    %v688 = vpack.c.bf16 %v687, %v687
    %v689 = vunpack.c.l.bf16 %v688
    %v690 = vld [vmem:[%s4] sm:$0xff]
    %v691 = vld [vmem:[%s4 + $0x8] sm:$0xff]
    %v692 = vld [vmem:[%s4 + $0x10] sm:$0xff]
    %v693 = vld [vmem:[%s4 + $0x18] sm:$0xff]
    %v694 = vld [vmem:[%s5] sm:$0x1]
    %v696 = vlaneseq
    %v697 = vshrl.u32 %v696, 7
    %v698 = vsub.s32 0, %v697
    %v699 = vrot.slane %v694, %v698
    %702 = vrot.lane.b32.xlu0 %v689, 64
    %v703 = vpop.permute.xlu0 %702
    %v704 = vsel %vm108, %v703, 0
    %706 = vmatprep.subr.mxu0 0.0
    %707 = vmatpush1.msra.mxu0 %v690
    %708 = vmatprep.subr.mxu0 0.0
    %709 = vmatpush1.msra.mxu0 %v691
    %710 = vmatprep.subr.mxu0 0.0
    %711 = vmatpush1.msra.mxu0 %v692
    %712 = vmatprep.subr.mxu0 0.0
    %713 = vmatpush1.msra.mxu0 %v693
    %714 = vmatprep.subr.mxu0 0.0
    %715 = vmatpush1.msra.mxu0 0.0
    %716 = vmatprep.subr.mxu0 0.0
    %717 = vmatpush1.msra.mxu0 0.0
    %718 = vmatprep.subr.mxu0 0.0
    %719 = vmatpush1.msra.mxu0 0.0
    %720 = vmatprep.subr.mxu0 0.0
    %721 = vmatpush1.msra.mxu0 0.0
    %722 = vmatprep.subr.mxu0 0.0
    %723 = vmatpush1.msra.mxu0 0.0
    %724 = vmatprep.subr.mxu0 0.0
    %725 = vmatpush1.msra.mxu0 0.0
    %726 = vmatprep.subr.mxu0 0.0
    %727 = vmatpush1.msra.mxu0 0.0
    %728 = vmatprep.subr.mxu0 0.0
    %729 = vmatpush1.msra.mxu0 0.0
    %730 = vmatprep.subr.mxu0 0.0
    %731 = vmatpush1.msra.mxu0 0.0
    %732 = vmatprep.subr.mxu0 0.0
    %733 = vmatpush1.msra.mxu0 0.0
    %734 = vmatprep.subr.mxu0 0.0
    %735 = vmatpush1.msra.mxu0 0.0
    %736 = vmatprep.subr.mxu0 0.0
    %737 = vmatpush1.msra.mxu0 0.0
    %738 = vmatprep.subr.mxu0 0.0
    %739 = vmatpush1.msra.mxu0 0.0
    %740 = vmatprep.subr.mxu0 0.0
    %741 = vmatpush1.msra.mxu0 0.0
    %742 = vmatprep.subr.mxu0 0.0
    %743 = vmatpush1.msra.mxu0 0.0
    %744 = vmatprep.subr.mxu0 0.0
    %745 = vmatpush1.msra.mxu0 0.0
    %746 = vmatprep.subr.mxu0 0.0
    %747 = vmatpush1.msra.mxu0 0.0
    %748 = vmatprep.subr.mxu0 0.0
    %749 = vmatpush1.msra.mxu0 0.0
    %750 = vmatprep.subr.mxu0 0.0
    %751 = vmatpush1.msra.mxu0 0.0
    %752 = vmatprep.subr.mxu0 0.0
    %753 = vmatpush1.msra.mxu0 0.0
    %754 = vmatprep.subr.mxu0 0.0
    %755 = vmatpush1.msra.mxu0 0.0
    %756 = vmatprep.subr.mxu0 0.0
    %757 = vmatpush1.msra.mxu0 0.0
    %758 = vmatprep.subr.mxu0 0.0
    %759 = vmatpush1.msra.mxu0 0.0
    %760 = vmatprep.subr.mxu0 0.0
    %761 = vmatpush1.msra.mxu0 0.0
    %762 = vmatprep.subr.mxu0 0.0
    %763 = vmatpush1.msra.mxu0 0.0
    %764 = vmatprep.subr.mxu0 0.0
    %765 = vmatpush1.msra.mxu0 0.0
    %766 = vmatprep.subr.mxu0 0.0
    %767 = vmatpush1.msra.mxu0 0.0
    %768 = vmatprep.subr.mxu0 0.0
    %769 = vmatpush1.msra.mxu0 0.0
    %770 = vmatprep.mubr.f32.mxu0 0.0
    %771 = vmatmul.mubr.f32.gmra.mrb[0].mxu0 %v704
    %v772 = vpop.f32.mrb[0].mxu0
    %v773 = vadd.f32 %v699, %v772
    %v774 = vpop.f32.mrb[0].mxu0
    %775 = vdwg.mxu0
    %v776 = vlaneseq
    %v777 = vand.u32 %v776, 127
    %vm778 = vcmp.ge.s32.totalorder %v777, 4
    %v779 = vmul.f32 %v773, 1.442695
    %v780 = vpow.pop %v779
    %v781 = vsel %vm778, %v780, %v773
    %vm782 = vcmask 58368
    %783 = vst.msk [vmem:[#allocation3] sm:$0x3] %vm782, %v781
    // Predicated region
    $region26: #{tpu_custom_call.1} parent=1 // pred_check
      _
    $region27: #{tpu_custom_call.1} parent=1 // pred_check_branch
      %785 = sbr.rel (0) target = $region29
    $region28: #{tpu_custom_call.1} parent=1 // pred_region
      %s787 = ssub.s32 32, 32
      %788 = vsyncadd [#allocation4], %s787
      %s790 = sshll.u32 [#allocation3], 4
      %s791 = int_to_ptr.vmem [resolvable:$true] %s790
      %793 = dma.vmem_to_hbm [thread:$0]  %s791, 32, %s6, [#allocation4]
    $region29: #{tpu_custom_call.1} parent=1 // pred_fallthru
      _
    // Predicated region
    $region30: #{tpu_custom_call.1} parent=1 // pred_check
      _
    $region31: #{tpu_custom_call.1} parent=1 // pred_check_branch
      %795 = sbr.rel (0) target = $region33
    $region32: #{tpu_custom_call.1} parent=1 // pred_region
      %796 = dma.done [#allocation4], 32
    $region33: #{tpu_custom_call.1} parent=1 // pred_fallthru
      _
    %797 = vsyncpa [#allocation4], 1

</llo_original>
